<compile_context>
chip_gen: v7x
topology: tpu7x:2x2x1
jax: 0.10.0
libtpu: 0.0.40
codegen_flags: <defaults>
</compile_context>

<pallas_src>
import functools

import jax
import jax.numpy as jnp
from jax.experimental import pallas as pl
from jax.experimental.pallas import tpu as pltpu


def head_kernel(cls_ref, w_ref, b_ref, labels_ref, logits_ref, loss_ref, *,
                num_labels, batch_size):
    i = pl.program_id(0)

    # Fused (pre_classifier @ classifier): single bf16 matmul, f32 MXU accumulate.
    x = cls_ref[...]                                              # (TM, H)
    if x.dtype != jnp.bfloat16:
        x = x.astype(jnp.bfloat16)
    logits = jnp.dot(x, w_ref[...],
                     preferred_element_type=jnp.float32) + b_ref[...]   # (TM, LP) f32
    # dropout(p) is identity in eval/inference mode.
    logits_ref[...] = logits.astype(logits_ref.dtype)             # lane-dense store

    # CrossEntropyLoss: per-row loss written per tile (no carried accumulator,
    # so the batch grid axis is fully parallel).  Computed only on the
    # un-padded L columns and only on rows of the real batch.
    tm, lp = logits.shape
    col_ids = jax.lax.broadcasted_iota(jnp.int32, (tm, lp), 1)
    col_valid = col_ids < num_labels
    masked = jnp.where(col_valid, logits, -jnp.inf)
    m = jnp.max(masked, axis=-1, keepdims=True)
    lse = jnp.log(jnp.sum(jnp.exp(masked - m), axis=-1, keepdims=True)) + m

    # one_hot implies col_valid, where masked == logits -> reuse `masked`.
    one_hot = jnp.logical_and(col_ids == labels_ref[...], col_valid)
    picked = jnp.sum(jnp.where(one_hot, masked, 0.0), axis=-1, keepdims=True)

    row_ids = jax.lax.broadcasted_iota(jnp.int32, (tm, 1), 0) + i * tm
    loss_ref[...] = jnp.where(row_ids < batch_size, lse - picked, 0.0)   # (TM, 1)


def prepare_head_params(w1, b1, w2, b2):
    """One-time head-parameter preparation (call once, reuse every step).

    Composes pre_classifier and classifier (valid: no activation between them),
    zero-pads the output dim to LP=ceil(L/128)*128 lanes, composes in f32, and
    casts the fused weight to bf16.  Returns (W_bf16 [H,LP], b_f32 [1,LP], L, LP).
    """
    H = w1.shape[0]
    L = w2.shape[1]
    LP = max(128, pl.cdiv(L, 128) * 128)

    w2_p = jnp.zeros((H, LP), dtype=jnp.float32).at[:, :L].set(w2.astype(jnp.float32))
    b2_p = jnp.zeros((LP,), dtype=jnp.float32).at[:L].set(b2.astype(jnp.float32))

    W = jnp.dot(w1.astype(jnp.float32), w2_p)          # (H, LP), composed in f32
    b = jnp.dot(b1.astype(jnp.float32), w2_p) + b2_p   # (LP,)   stays f32
    return W.astype(jnp.bfloat16), b.reshape(1, LP), int(L), int(LP)


def modified_model4_head(hidden_states_layer4, head_params, labels, *,
                         block_b=512, logits_dtype=jnp.float32):
    """hidden_states_layer4: [B, S, H] (f32 or bf16); head_params: output of
       prepare_head_params; labels: [B] int.
       Returns (logits [B, L] logits_dtype, loss scalar f32)."""
    W_bf, b_f32, L, LP = head_params
    B, S, H = hidden_states_layer4.shape

    labels_2d = labels.reshape(B, 1).astype(jnp.int32)

    # Fuse the CLS slice into the BlockSpec: view [B,S,H] as [B,S*H]; the
    # (TM, H) block at column-block 0 is exactly each row's CLS token, so only
    # B*H elements are DMA'd (strided rows).
    if S == 1 or H % 128 == 0:
        x_in = hidden_states_layer4.reshape(B, S * H)
    else:
        # TODO(synk): lane-alignment fallback — slice CLS in the wrapper when
        # H is not a multiple of 128 (the reshape trick needs 128-aligned blocks).
        x_in = hidden_states_layer4[:, 0, :]

    # Batch tiling: TM rows per grid step; the fused weight/bias stay
    # VMEM-resident across steps (constant index_map).
    TM = B if B <= block_b else (block_b // 8) * 8
    grid = (pl.cdiv(B, TM),)

    kernel = functools.partial(head_kernel, num_labels=L, batch_size=B)

    logits_p, per_row_loss = pl.pallas_call(
        kernel,
        grid=grid,
        out_shape=(
            jax.ShapeDtypeStruct((B, LP), logits_dtype),   # lane-padded logits
            jax.ShapeDtypeStruct((B, 1), jnp.float32),     # per-row CE loss
        ),
        in_specs=[
            pl.BlockSpec((TM, H), lambda i: (i, 0)),       # CLS rows (strided DMA)
            pl.BlockSpec((H, LP), lambda i: (0, 0)),       # fused W (VMEM-resident)
            pl.BlockSpec((1, LP), lambda i: (0, 0)),       # fused bias
            pl.BlockSpec((TM, 1), lambda i: (i, 0)),       # labels
        ],
        out_specs=(
            pl.BlockSpec((TM, LP), lambda i: (i, 0)),      # lane-dense logits slab
            pl.BlockSpec((TM, 1), lambda i: (i, 0)),       # per-row loss
        ),
        compiler_params=pltpu.CompilerParams(
            # No carried state across tiles -> batch axis is parallel
            # (lets v7x split the grid across its two TensorCores).
            dimension_semantics=("parallel",),
        ),
    )(x_in, W_bf, b_f32, labels_2d)

    loss = jnp.sum(per_row_loss) * (1.0 / B)
    return logits_p[:, :L], loss


def reference_head(hidden_states_layer4, w1, b1, w2, b2, labels):
    cls_tok = hidden_states_layer4[:, 0, :]
    h = cls_tok @ w1 + b1
    logits = h @ w2 + b2
    logp = jax.nn.log_softmax(logits, axis=-1)
    loss = -jnp.mean(logp[jnp.arange(logits.shape[0]), labels])
    return logits, loss


if __name__ == "__main__":
    # Small demo shapes consistent with the head: batch=2, seq=8, hidden=128,
    # num_labels=2 (hidden chosen lane-aligned, like real DistilBERT's 768).
    B, S, H, L = 2, 8, 128, 2

    key = jax.random.PRNGKey(0)
    k_x, k_w1, k_b1, k_w2, k_b2, k_lbl = jax.random.split(key, 6)

    # Simulated layer-4 hidden states from the (out-of-scope) backbone.
    # TODO(synk): the original_model transformer backbone itself is not re-implemented here.
    hidden4 = jax.random.normal(k_x, (B, S, H), dtype=jnp.float32)

    # Head parameters stored as (in, out) so the kernel computes x @ W + b.
    w1 = jax.random.normal(k_w1, (H, H), dtype=jnp.float32) * 0.05
    b1 = jax.random.normal(k_b1, (H,), dtype=jnp.float32) * 0.05
    w2 = jax.random.normal(k_w2, (H, L), dtype=jnp.float32) * 0.05
    b2 = jax.random.normal(k_b2, (L,), dtype=jnp.float32) * 0.05
    labels = jax.random.randint(k_lbl, (B,), 0, L, dtype=jnp.int32)

    # One-time weight prep (fusion + padding + bf16 cast), hoisted out of the call.
    head_params = prepare_head_params(w1, b1, w2, b2)
    head_params = jax.block_until_ready(head_params)

    logits, loss = modified_model4_head(hidden4, head_params, labels)
    jax.block_until_ready((logits, loss))

    ref_logits, ref_loss = reference_head(hidden4, w1, b1, w2, b2, labels)
    # Kernel uses a bf16 fused weight (composed in f32) with f32 accumulation ->
    # compare against the full-f32 reference at bf16-appropriate tolerance.
    assert jnp.allclose(logits, ref_logits, atol=3e-2, rtol=3e-2)
    assert jnp.allclose(loss, ref_loss, atol=3e-2, rtol=3e-2)

    print("KERNEL_OK")
</pallas_src>

<mosaic_0001>
module attributes {stable_mosaic.version = 11 : i64} {
  func.func @head_kernel(%arg0: i32, %arg1: memref<2x128xf32, #tpu.memory_space<vmem>>, %arg2: memref<128x128xbf16, #tpu.memory_space<vmem>>, %arg3: memref<1x128xf32, #tpu.memory_space<vmem>>, %arg4: memref<2x1xi32, #tpu.memory_space<vmem>>, %arg5: memref<2x128xf32, #tpu.memory_space<vmem>>, %arg6: memref<2x1xf32, #tpu.memory_space<vmem>>) attributes {dimension_semantics = [#tpu.dimension_semantics<parallel>], iteration_bounds = array<i64: 1>, scalar_prefetch = 0 : i64, scratch_operands = 0 : i64, tpu.core_type = #tpu.core_type<tc>, window_params = [{transform_indices = @transform_0, window_bounds = array<i64: 2, 128>}, {pipeline_mode = #tpu.pipeline_mode<synchronous>, transform_indices = @transform_1, window_bounds = array<i64: 128, 128>}, {pipeline_mode = #tpu.pipeline_mode<synchronous>, transform_indices = @transform_2, window_bounds = array<i64: 1, 128>}, {transform_indices = @transform_3, window_bounds = array<i64: 2, 1>}, {transform_indices = @transform_4, window_bounds = array<i64: 2, 128>}, {transform_indices = @transform_5, window_bounds = array<i64: 2, 1>}]} {
    %c0 = arith.constant 0 : index
    %c0_0 = arith.constant 0 : index
    %0 = vector.load %arg1[%c0, %c0_0] : memref<2x128xf32, #tpu.memory_space<vmem>>, vector<2x128xf32>
    %1 = arith.truncf %0 : vector<2x128xf32> to vector<2x128xbf16>
    %c0_1 = arith.constant 0 : index
    %c0_2 = arith.constant 0 : index
    %2 = vector.load %arg2[%c0_1, %c0_2] : memref<128x128xbf16, #tpu.memory_space<vmem>>, vector<128x128xbf16>
    %cst = arith.constant dense<0.000000e+00> : vector<2x128xf32>
    %3 = tpu.matmul %1, %2, %cst {dimension_numbers = #tpu.dot_dimension_numbers<[1], [0], [0], [1], [0, 0, 1, 1], [], []>} : vector<2x128xbf16>, vector<128x128xbf16>, vector<2x128xf32> -> vector<2x128xf32>
    %c0_3 = arith.constant 0 : index
    %c0_4 = arith.constant 0 : index
    %4 = vector.load %arg3[%c0_3, %c0_4] : memref<1x128xf32, #tpu.memory_space<vmem>>, vector<1x128xf32>
    %5 = vector.broadcast %4 : vector<1x128xf32> to vector<2x128xf32>
    %6 = arith.addf %3, %5 : vector<2x128xf32>
    %c0_5 = arith.constant 0 : index
    %c0_6 = arith.constant 0 : index
    %7 = vector.load %arg5[%c0_5, %c0_6] : memref<2x128xf32, #tpu.memory_space<vmem>>, vector<2x128xf32>
    tpu.vector_store %arg5[%c0_5, %c0_6], %6 {strides = array<i32>} : memref<2x128xf32, #tpu.memory_space<vmem>>, vector<2x128xf32>,
    %8 = tpu.iota {dimensions = array<i32: 1>} : vector<2x128xi32>
    %c2_i32 = arith.constant 2 : i32
    %9 = vector.broadcast %c2_i32 : i32 to vector<2x128xi32>
    %10 = arith.cmpi slt, %8, %9 : vector<2x128xi32>
    %cst_7 = arith.constant 0xFF800000 : f32
    %11 = vector.broadcast %cst_7 : f32 to vector<2x128xf32>
    %12 = arith.select %10, %6, %11 : vector<2x128xi1>, vector<2x128xf32>
    %cst_8 = arith.constant dense<0xFF800000> : vector<2xf32>
    %13 = vector.multi_reduction <maximumf>, %12, %cst_8 [1] : vector<2x128xf32> to vector<2xf32>
    %14 = vector.shape_cast %13 : vector<2xf32> to vector<2x1xf32>
    %15 = vector.broadcast %14 : vector<2x1xf32> to vector<2x128xf32>
    %16 = arith.subf %12, %15 : vector<2x128xf32>
    %17 = math.exp %16 : vector<2x128xf32>
    %cst_9 = arith.constant dense<0.000000e+00> : vector<2xf32>
    %18 = vector.multi_reduction <add>, %17, %cst_9 [1] : vector<2x128xf32> to vector<2xf32>
    %19 = vector.shape_cast %18 : vector<2xf32> to vector<2x1xf32>
    %20 = math.log %19 : vector<2x1xf32>
    %21 = arith.addf %20, %14 : vector<2x1xf32>
    %c0_10 = arith.constant 0 : index
    %c0_11 = arith.constant 0 : index
    %22 = vector.load %arg4[%c0_10, %c0_11] : memref<2x1xi32, #tpu.memory_space<vmem>>, vector<2x1xi32>
    %23 = vector.broadcast %22 : vector<2x1xi32> to vector<2x128xi32>
    %24 = arith.cmpi eq, %8, %23 : vector<2x128xi32>
    %25 = arith.andi %24, %10 : vector<2x128xi1>
    %cst_12 = arith.constant 0.000000e+00 : f32
    %26 = vector.broadcast %cst_12 : f32 to vector<2x128xf32>
    %27 = arith.select %25, %12, %26 : vector<2x128xi1>, vector<2x128xf32>
    %cst_13 = arith.constant dense<0.000000e+00> : vector<2xf32>
    %28 = vector.multi_reduction <add>, %27, %cst_13 [1] : vector<2x128xf32> to vector<2xf32>
    %29 = vector.shape_cast %28 : vector<2xf32> to vector<2x1xf32>
    %30 = tpu.iota {dimensions = array<i32: 0>} : vector<2x1xi32>
    %c2_i32_14 = arith.constant 2 : i32
    %31 = arith.muli %arg0, %c2_i32_14 : i32
    %32 = vector.broadcast %31 : i32 to vector<2x1xi32>
    %33 = arith.addi %30, %32 : vector<2x1xi32>
    %c2_i32_15 = arith.constant 2 : i32
    %34 = vector.broadcast %c2_i32_15 : i32 to vector<2x1xi32>
    %35 = arith.cmpi slt, %33, %34 : vector<2x1xi32>
    %36 = arith.subf %21, %29 : vector<2x1xf32>
    %cst_16 = arith.constant 0.000000e+00 : f32
    %37 = vector.broadcast %cst_16 : f32 to vector<2x1xf32>
    %38 = arith.select %35, %36, %37 : vector<2x1xi1>, vector<2x1xf32>
    %c0_17 = arith.constant 0 : index
    %c0_18 = arith.constant 0 : index
    %39 = vector.load %arg6[%c0_17, %c0_18] : memref<2x1xf32, #tpu.memory_space<vmem>>, vector<2x1xf32>
    tpu.vector_store %arg6[%c0_17, %c0_18], %38 {strides = array<i32>} : memref<2x1xf32, #tpu.memory_space<vmem>>, vector<2x1xf32>,
    return
  }
  func.func @transform_0(%arg0: i32) -> (i32, i32) {
    %c0_i32 = arith.constant 0 : i32
    %c0_i32_0 = arith.constant 0 : i32
    return %arg0, %c0_i32 : i32, i32
  }
  func.func @transform_1(%arg0: i32) -> (i32, i32) {
    %c0_i32 = arith.constant 0 : i32
    %c0_i32_0 = arith.constant 0 : i32
    %c0_i32_1 = arith.constant 0 : i32
    return %c0_i32, %c0_i32_0 : i32, i32
  }
  func.func @transform_2(%arg0: i32) -> (i32, i32) {
    %c0_i32 = arith.constant 0 : i32
    %c0_i32_0 = arith.constant 0 : i32
    %c0_i32_1 = arith.constant 0 : i32
    return %c0_i32, %c0_i32_0 : i32, i32
  }
  func.func @transform_3(%arg0: i32) -> (i32, i32) {
    %c0_i32 = arith.constant 0 : i32
    %c0_i32_0 = arith.constant 0 : i32
    return %arg0, %c0_i32 : i32, i32
  }
  func.func @transform_4(%arg0: i32) -> (i32, i32) {
    %c0_i32 = arith.constant 0 : i32
    %c0_i32_0 = arith.constant 0 : i32
    return %arg0, %c0_i32 : i32, i32
  }
  func.func @transform_5(%arg0: i32) -> (i32, i32) {
    %c0_i32 = arith.constant 0 : i32
    %c0_i32_0 = arith.constant 0 : i32
    return %arg0, %c0_i32 : i32, i32
  }
}

</mosaic_0001>

<llo_original>
// kernel: tpu_custom_call.1
$region0: #{tpu_custom_call.1}
  #allocation0 [shape = 'u32[]', space=smem, size = 0x4, offset = 0x4, fixed_abs, tag = 'smem constant byte address 0x4 - core index']
  #allocation1 [shape = 'u32[144,128]{1,0:T(1,128)}', space=vmem, size = 0x12000, scoped, tag = 'internal scratch']
  %s0 = inlined_call_operand.hbm [shape: f32[2,1024], index: 0, kind: input, shape index: {}]
  %s1 = inlined_call_operand.hbm [shape: bf16[128,128], index: 1, kind: input, shape index: {}]
  %s2 = inlined_call_operand.vmem [shape: f32[1,128], index: 2, kind: input, shape index: {}]
  %s3 = inlined_call_operand.vmem [shape: s32[2,1], index: 3, kind: input, shape index: {}]
  %s4 = inlined_call_operand.hbm [shape: f32[2,128], index: 4, kind: output, shape index: {0}]
  %s5 = inlined_call_operand.vmem [shape: f32[2,1], index: 5, kind: output, shape index: {1}]
  %6 = xla_tuple %s4, %s5
  %s7 = sld [smem:[#allocation0]]
  $region42: #{tpu_custom_call.1} parent=0
    _
  %s9 = ssub.s32 1, %s7
  %s10 = scalar_select 0, %s9, %s7
  $region1: #{tpu_custom_call.1} parent=0
    #allocation2 [shape = 'u8[1024]{0}', space=vmem, size = 0x400, scoped, tag = 'input window, operand 0, single buffered']
    #allocation3 [shape = 's32[1]{0}', space=sflag, size = 0x4, scoped, tag = 'scoped memory for tpu_custom_call.1']
    #allocation4 [shape = 's32[1]{0}', space=sflag, size = 0x4, scoped, tag = 'scoped memory for tpu_custom_call.1']
    #allocation5 [shape = 'u8[32768]{0}', space=vmem, size = 0x8000, scoped, tag = 'input window, operand 1, single buffered']
    #allocation6 [shape = 's32[1]{0}', space=sflag, size = 0x4, scoped, tag = 'scoped memory for tpu_custom_call.1']
    #allocation7 [shape = 'u8[1024]{0}', space=vmem, size = 0x400, scoped, tag = 'output window, operand 0, single buffered']
    %11 = vsyncpa [#allocation3], 0
    %12 = vsyncpa [#allocation6], 0
    %13 = vsyncpa [#allocation4], 0
    // Predicated region
    $region2: #{tpu_custom_call.1} parent=1 // pred_check
      _
    $region3: #{tpu_custom_call.1} parent=1 // pred_check_branch
      %15 = sbr.rel (0) target = $region5
    $region4: #{tpu_custom_call.1} parent=1 // pred_region
      %s17 = ssub.s32 32, 32
      %18 = vsyncadd [#allocation3], %s17
      %s20 = sshll.u32 [#allocation2], 4
      %s21 = int_to_ptr.vmem [resolvable:$true] %s20
      %23 = dma.hbm_to_vmem [thread:$0]  %s0, 32, %s21, [#allocation3]
    $region5: #{tpu_custom_call.1} parent=1 // pred_fallthru
      _
    // Predicated region
    $region6: #{tpu_custom_call.1} parent=1 // pred_check
      _
    $region7: #{tpu_custom_call.1} parent=1 // pred_check_branch
      %25 = sbr.rel (0) target = $region9
    $region8: #{tpu_custom_call.1} parent=1 // pred_region
      %s27 = ssub.s32 1024, 1024
      %28 = vsyncadd [#allocation6], %s27
      %s29 = sshll.u32 [#allocation5], 4
      %s30 = int_to_ptr.vmem [resolvable:$true] %s29
      %35 = dma.hbm_to_vmem [thread:$0]  %s1, 1024, %s30, [#allocation6], 64, 64, 4
    $region9: #{tpu_custom_call.1} parent=1 // pred_fallthru
      _
    // Predicated region
    $region10: #{tpu_custom_call.1} parent=1 // pred_check
      _
    $region11: #{tpu_custom_call.1} parent=1 // pred_check_branch
      %37 = sbr.rel (0) target = $region13
    $region12: #{tpu_custom_call.1} parent=1 // pred_region
      _
    $region13: #{tpu_custom_call.1} parent=1 // pred_fallthru
      _
    // Predicated region
    $region14: #{tpu_custom_call.1} parent=1 // pred_check
      _
    $region15: #{tpu_custom_call.1} parent=1 // pred_check_branch
      %39 = sbr.rel (0) target = $region17
    $region16: #{tpu_custom_call.1} parent=1 // pred_region
      _
    $region17: #{tpu_custom_call.1} parent=1 // pred_fallthru
      _
    // Predicated region
    $region18: #{tpu_custom_call.1} parent=1 // pred_check
      _
    $region19: #{tpu_custom_call.1} parent=1 // pred_check_branch
      %41 = sbr.rel (0) target = $region21
    $region20: #{tpu_custom_call.1} parent=1 // pred_region
      %42 = dma.done [#allocation3], 32
    $region21: #{tpu_custom_call.1} parent=1 // pred_fallthru
      _
    // Predicated region
    $region22: #{tpu_custom_call.1} parent=1 // pred_check
      _
    $region23: #{tpu_custom_call.1} parent=1 // pred_check_branch
      %44 = sbr.rel (0) target = $region25
    $region24: #{tpu_custom_call.1} parent=1 // pred_region
      %45 = dma.done [#allocation6], 1024
    $region25: #{tpu_custom_call.1} parent=1 // pred_fallthru
      _
    %v47 = vld [vmem:[#allocation2] sm:$0x3]
    %v48 = vpack.c.bf16 %v47, %v47
    %v49 = vld [vmem:[#allocation5] sm:$0xf]
    %v50 = vld [vmem:[#allocation5 + $0x4] sm:$0xf]
    %v51 = vld [vmem:[#allocation5 + $0x8] sm:$0xf]
    %v52 = vld [vmem:[#allocation5 + $0xc] sm:$0xf]
    %v53 = vld [vmem:[#allocation5 + $0x10] sm:$0xf]
    %v54 = vld [vmem:[#allocation5 + $0x14] sm:$0xf]
    %v55 = vld [vmem:[#allocation5 + $0x18] sm:$0xf]
    %v56 = vld [vmem:[#allocation5 + $0x1c] sm:$0xf]
    %v57 = vld [vmem:[#allocation5 + $0x20] sm:$0xf]
    %v58 = vld [vmem:[#allocation5 + $0x24] sm:$0xf]
    %v59 = vld [vmem:[#allocation5 + $0x28] sm:$0xf]
    %v60 = vld [vmem:[#allocation5 + $0x2c] sm:$0xf]
    %v61 = vld [vmem:[#allocation5 + $0x30] sm:$0xf]
    %v62 = vld [vmem:[#allocation5 + $0x34] sm:$0xf]
    %v63 = vld [vmem:[#allocation5 + $0x38] sm:$0xf]
    %v64 = vld [vmem:[#allocation5 + $0x3c] sm:$0xf]
    %v65 = vld [vmem:[%s2] sm:$0x1]
    %v67 = vlaneseq
    %v68 = vshrl.u32 %v67, 7
    %v69 = vsub.s32 0, %v68
    %v70 = vrot.slane %v65, %v69
    %v88 = vunpack.c.l.b16 %v49
    %v89 = vunpack.c.l.b16 %v50
    %v90 = vunpack.c.l.b16 %v51
    %v91 = vunpack.c.l.b16 %v52
    %v92 = vunpack.c.l.b16 %v53
    %v93 = vunpack.c.l.b16 %v54
    %v94 = vunpack.c.l.b16 %v55
    %v95 = vunpack.c.l.b16 %v56
    %v96 = vunpack.c.l.b16 %v57
    %v97 = vunpack.c.l.b16 %v58
    %v98 = vunpack.c.l.b16 %v59
    %v99 = vunpack.c.l.b16 %v60
    %v100 = vunpack.c.l.b16 %v61
    %v101 = vunpack.c.l.b16 %v62
    %v102 = vunpack.c.l.b16 %v63
    %v103 = vunpack.c.l.b16 %v64
    %v104 = vpack.c.b16 %v89, %v88
    %v105 = vpack.c.b16 %v91, %v90
    %v106 = vpack.c.b16 %v93, %v92
    %v107 = vpack.c.b16 %v95, %v94
    %v108 = vpack.c.b16 %v97, %v96
    %v109 = vpack.c.b16 %v99, %v98
    %v110 = vpack.c.b16 %v101, %v100
    %v111 = vpack.c.b16 %v103, %v102
    %120 = vmatprep.subr.bf16.mxu0 0
    %121 = vmatpush1.bf16.msra.mxu0 %v104
    %122 = vmatprep.subr.bf16.mxu0 0
    %123 = vmatpush1.bf16.msra.mxu0 %v105
    %124 = vmatprep.subr.bf16.mxu0 0
    %125 = vmatpush1.bf16.msra.mxu0 %v106
    %126 = vmatprep.subr.bf16.mxu0 0
    %127 = vmatpush1.bf16.msra.mxu0 %v107
    %128 = vmatprep.subr.bf16.mxu0 0
    %129 = vmatpush1.bf16.msra.mxu0 %v108
    %130 = vmatprep.subr.bf16.mxu0 0
    %131 = vmatpush1.bf16.msra.mxu0 %v109
    %132 = vmatprep.subr.bf16.mxu0 0
    %133 = vmatpush1.bf16.msra.mxu0 %v110
    %134 = vmatprep.subr.bf16.mxu0 0
    %135 = vmatpush1.bf16.msra.mxu0 %v111
    %136 = vmatprep.subr.bf16.mxu0 0
    %137 = vmatpush1.bf16.msra.mxu0 0
    %138 = vmatprep.subr.bf16.mxu0 0
    %139 = vmatpush1.bf16.msra.mxu0 0
    %140 = vmatprep.subr.bf16.mxu0 0
    %141 = vmatpush1.bf16.msra.mxu0 0
    %142 = vmatprep.subr.bf16.mxu0 0
    %143 = vmatpush1.bf16.msra.mxu0 0
    %144 = vmatprep.subr.bf16.mxu0 0
    %145 = vmatpush1.bf16.msra.mxu0 0
    %146 = vmatprep.subr.bf16.mxu0 0
    %147 = vmatpush1.bf16.msra.mxu0 0
    %148 = vmatprep.subr.bf16.mxu0 0
    %149 = vmatpush1.bf16.msra.mxu0 0
    %150 = vmatprep.subr.bf16.mxu0 0
    %151 = vmatpush1.bf16.msra.mxu0 0
    %152 = vmatprep.mubr.bf16.mxu0 0
    %153 = vmatmul.mubr.bf16.gmra.mrb[0].mxu0 %v48
    %v154 = vpop.f32.mrb[0].mxu0
    %v155 = vadd.f32 %v70, %v154
    %v156 = vpop.f32.mrb[0].mxu0
    %v157 = vpop.f32.mrb[0].mxu0
    %v158 = vpop.f32.mrb[0].mxu0
    %159 = vdwg.mxu0
    %160 = vst [vmem:[#allocation7] sm:$0x3] %v155
    %v161 = vlaneseq
    %v162 = vand.u32 %v161, 127
    %vm163 = vcmp.lt.s32.totalorder %v162, 2
    %v164 = vsel %vm163, %v155, -inf
    %vm165 = vcmask 1041408
    %v166 = vsel %vm165, %v164, -inf
    %167 = vmax.xlane.f32.xlu0 %v166
    %v168 = vpop.xlane.xlu0 %167
    %v169 = vsub.f32 %v164, %v168
    %v170 = vmul.f32 %v169, 1.442695
    %v171 = vpow.pop %v170
    %v172 = vsel %vm165, %v171, 0.0
    %173 = vadd.xlane.f32.xlu0 %v172
    %v174 = vpop.xlane.xlu0 %173
    %v175 = vlog2.pop %v174
    %v176 = vmul.f32 %v175, 0.6931472
    %v177 = vadd.f32 %v176, %v168
    %v178 = vld [vmem:[%s3] sm:$0x3]
    %179 = vset.pattern.permute.xlu0 0
    %180 = vperm.xlu0 %179, %v178
    %v181 = vpop.permute.xlu0 %180
    %vm182 = vcmp.eq.s32.totalorder %v162, %v181
    %vm183 = vmand %vm182, %vm163
    %v184 = vsel %vm183, %v164, 0.0
    %v185 = vsel %vm165, %v184, 0.0
    %186 = vadd.xlane.f32.xlu0 %v185
    %v187 = vpop.xlane.xlu0 %186
    %v188 = vlaneseq
    %v189 = vshrl.u32 %v188, 7
    %s190 = smul.u32 0, 2
    %v191 = vstv %s190
    %v192 = vadd.s32 %v189, %v191
    %vm193 = vcmp.lt.s32.totalorder %v192, 2
    %v194 = vsub.f32 %v177, %v187
    %v195 = vsel %vm193, %v194, 0.0
    %vm196 = vcmask 1024
    %197 = vst.msk [vmem:[%s5] sm:$0x3] %vm196, %v195
    // Predicated region
    $region26: #{tpu_custom_call.1} parent=1 // pred_check
      _
    $region27: #{tpu_custom_call.1} parent=1 // pred_check_branch
      %199 = sbr.rel (0) target = $region29
    $region28: #{tpu_custom_call.1} parent=1 // pred_region
      %s201 = ssub.s32 32, 32
      %202 = vsyncadd [#allocation4], %s201
      %s204 = sshll.u32 [#allocation7], 4
      %s205 = int_to_ptr.vmem [resolvable:$true] %s204
      %207 = dma.vmem_to_hbm [thread:$0]  %s205, 32, %s4, [#allocation4]
    $region29: #{tpu_custom_call.1} parent=1 // pred_fallthru
      _
    // Predicated region
    $region30: #{tpu_custom_call.1} parent=1 // pred_check
      _
    $region31: #{tpu_custom_call.1} parent=1 // pred_check_branch
      %209 = sbr.rel (0) target = $region33
    $region32: #{tpu_custom_call.1} parent=1 // pred_region
      _
    $region33: #{tpu_custom_call.1} parent=1 // pred_fallthru
      _
    // Predicated region
    $region34: #{tpu_custom_call.1} parent=1 // pred_check
      _
    $region35: #{tpu_custom_call.1} parent=1 // pred_check_branch
      %211 = sbr.rel (0) target = $region37
    $region36: #{tpu_custom_call.1} parent=1 // pred_region
      %212 = dma.done [#allocation4], 32
    $region37: #{tpu_custom_call.1} parent=1 // pred_fallthru
      _
    // Predicated region
    $region38: #{tpu_custom_call.1} parent=1 // pred_check
      _
    $region39: #{tpu_custom_call.1} parent=1 // pred_check_branch
      %214 = sbr.rel (0) target = $region41
    $region40: #{tpu_custom_call.1} parent=1 // pred_region
      _
    $region41: #{tpu_custom_call.1} parent=1 // pred_fallthru
      _
    %215 = vsyncpa [#allocation3], 1
    %216 = vsyncpa [#allocation6], 1
    %217 = vsyncpa [#allocation4], 1

</llo_original>
